<compile_context>
chip_gen: v5e
topology: v5e:2x2
jax: 0.10.0
libtpu: 0.0.40
codegen_flags: <defaults>
</compile_context>

<pallas_src>
import jax
import jax.numpy as jnp
from jax.experimental import pallas as pl
from jax.experimental.pallas import tpu as pltpu


def _round_up(x, m):
    return (x + m - 1) // m * m


# --------------------------------------------------------------------------
# Pallas kernel: per-row bilinear form  o[b] = e1[b] @ W @ e2[b]
# --------------------------------------------------------------------------
def _bilinear_kernel(e1_ref, e2_ref, w_ref, o_ref):
    # e1_ref, e2_ref: (tb, D) bf16   w_ref: (D, D) bf16   o_ref: (1, tb) f32
    # MXU: (tb, D) @ (D, D), f32 accumulation.
    t = jnp.dot(e1_ref[...], w_ref[...], preferred_element_type=jnp.float32)
    # VPU multiply + XLU lane-reduce -> one scalar per row.
    row = jnp.sum(t * e2_ref[...].astype(jnp.float32), axis=-1)      # (tb,)
    # Lane-dense store: one unmasked (1, tb) row per grid step.
    o_ref[...] = row[None, :].astype(o_ref.dtype)


def bilinear_form_pallas(e1, e2, w, *, tb=512):
    """e1, e2: (B, D); w: (D, D). Returns (B,) float32 with o[b] = e1[b] @ w @ e2[b]."""
    B, D = e1.shape
    # Row tile: multiple of 128 (lane-dense output rows, full MXU row occupancy),
    # capped so tiny batches do not allocate an oversized tile.
    tb = min(tb, _round_up(B, 128))
    b_pad = _round_up(B, tb)
    if b_pad != B:
        pad = b_pad - B
        e1 = jnp.pad(e1, ((0, pad), (0, 0)))
        e2 = jnp.pad(e2, ((0, pad), (0, 0)))
    n_tiles = b_pad // tb

    out = pl.pallas_call(
        _bilinear_kernel,
        out_shape=jax.ShapeDtypeStruct((n_tiles, tb), jnp.float32),
        grid_spec=pltpu.PrefetchScalarGridSpec(
            num_scalar_prefetch=0,
            grid=(n_tiles,),
            in_specs=[
                pl.BlockSpec((tb, D), lambda i: (i, 0)),   # e1 rows
                pl.BlockSpec((tb, D), lambda i: (i, 0)),   # e2 rows
                # Constant index_map: W is DMA'd once and stays resident.
                pl.BlockSpec((D, D), lambda i: (0, 0)),
            ],
            out_specs=pl.BlockSpec((1, tb), lambda i: (i, 0)),
        ),
        compiler_params=pltpu.CompilerParams(
            dimension_semantics=("parallel",),       # megacore sharding on v7x
            vmem_limit_bytes=48 * 1024 * 1024,       # headroom for large tb / D
        ),
    )(e1, e2, w)
    # (n_tiles, tb) -> (b_pad,) row-major preserves original row order.
    return out.reshape(-1)[:B]


# --------------------------------------------------------------------------
# BilinearVector module (JAX/Pallas)
# --------------------------------------------------------------------------
class BilinearVector:
    def __init__(self, num_entity, dim, separate_io=True, use_bias=False,
                 key=jax.random.PRNGKey(0)):
        k_in, k_out, k_w, k_b = jax.random.split(key, 4)
        # torch.nn.Embedding default init: N(0, 1)
        self.embeddings_in = jax.random.normal(k_in, (num_entity, dim),
                                               dtype=jnp.float32)
        if separate_io:
            self.embeddings_out = jax.random.normal(k_out, (num_entity, dim),
                                                    dtype=jnp.float32)
        else:
            self.embeddings_out = self.embeddings_in
        # torch.nn.Bilinear default init: U(-1/sqrt(in1), 1/sqrt(in1))
        bound = 1.0 / (dim ** 0.5)
        self.weight = jax.random.uniform(k_w, (dim, dim), dtype=jnp.float32,
                                         minval=-bound, maxval=bound)
        self.bias = (jax.random.uniform(k_b, (), dtype=jnp.float32,
                                        minval=-bound, maxval=bound)
                     if use_bias else None)
        self.use_bias = use_bias
        self.dim = dim

    def __call__(self, idxs):
        # idxs: integer array of shape (..., 2)
        batch_shape = idxs.shape[:-1]
        # TODO(synk): for the small-D memory-bound regime, fuse this gather into
        # the kernel (scalar-prefetch idxs + manual DMA of embedding rows from
        # HBM) instead of materializing gathered (B, D) copies.
        e1 = jnp.take(self.embeddings_in, idxs[..., 0], axis=0)   # (..., D)
        e2 = jnp.take(self.embeddings_out, idxs[..., 1], axis=0)  # (..., D)
        e1f = e1.reshape(-1, self.dim).astype(jnp.bfloat16)
        e2f = e2.reshape(-1, self.dim).astype(jnp.bfloat16)
        wf = self.weight.astype(jnp.bfloat16)
        logits = bilinear_form_pallas(e1f, e2f, wf)
        if self.use_bias:
            logits = logits + self.bias
        return logits.reshape(batch_shape)


# --------------------------------------------------------------------------
# Reference (pure JAX, same bf16 input rounding, f32 math) for sanity check
# --------------------------------------------------------------------------
def reference_forward(model, idxs):
    e1 = jnp.take(model.embeddings_in, idxs[..., 0], axis=0)
    e2 = jnp.take(model.embeddings_out, idxs[..., 1], axis=0)
    e1 = e1.astype(jnp.bfloat16).astype(jnp.float32)
    e2 = e2.astype(jnp.bfloat16).astype(jnp.float32)
    w = model.weight.astype(jnp.bfloat16).astype(jnp.float32)
    out = jnp.einsum("...i,ij,...j->...", e1, w, e2,
                     precision=jax.lax.Precision.HIGHEST)
    if model.use_bias:
        out = out + model.bias
    return out


if __name__ == "__main__":
    key = jax.random.PRNGKey(0)
    num_entity, dim = 64, 32
    batch, negs = 4, 4          # idxs shape (batch, negs, 2) -> B = 16 rows

    for use_bias in (False, True):
        model = BilinearVector(num_entity, dim, separate_io=True,
                               use_bias=use_bias, key=key)
        idx_key = jax.random.fold_in(key, 1)
        idxs = jax.random.randint(idx_key, (batch, negs, 2), 0, num_entity,
                                  dtype=jnp.int32)
        logits = jax.block_until_ready(model(idxs))
        ref = reference_forward(model, idxs)
        assert logits.shape == (batch, negs)
        assert jnp.allclose(logits, ref, atol=2e-3, rtol=2e-3), (
            float(jnp.max(jnp.abs(logits - ref))))

    # Multi-tile + padding path of the raw kernel (B=320 with tb=128 -> 3 tiles).
    kb = jax.random.fold_in(key, 2)
    B2, D2 = 320, 32
    a = jax.random.normal(kb, (B2, D2), jnp.float32).astype(jnp.bfloat16)
    b = jax.random.normal(jax.random.fold_in(kb, 1), (B2, D2),
                          jnp.float32).astype(jnp.bfloat16)
    w2 = jax.random.normal(jax.random.fold_in(kb, 2), (D2, D2),
                           jnp.float32).astype(jnp.bfloat16)
    got = jax.block_until_ready(bilinear_form_pallas(a, b, w2, tb=128))
    want = jnp.einsum("bi,ij,bj->b",
                      a.astype(jnp.float32), w2.astype(jnp.float32),
                      b.astype(jnp.float32),
                      precision=jax.lax.Precision.HIGHEST)
    assert got.shape == (B2,)
    assert jnp.allclose(got, want, atol=2e-3, rtol=2e-3), (
        float(jnp.max(jnp.abs(got - want))))

    print("KERNEL_OK")
</pallas_src>

<mosaic_0001>
module attributes {stable_mosaic.version = 11 : i64} {
  func.func @_bilinear_kernel(%arg0: i32, %arg1: memref<128x32xbf16, #tpu.memory_space<vmem>>, %arg2: memref<128x32xbf16, #tpu.memory_space<vmem>>, %arg3: memref<32x32xbf16, #tpu.memory_space<vmem>>, %arg4: memref<1x128xf32, #tpu.memory_space<vmem>>) attributes {dimension_semantics = [#tpu.dimension_semantics<parallel>], iteration_bounds = array<i64: 1>, scalar_prefetch = 0 : i64, scratch_operands = 0 : i64, tpu.core_type = #tpu.core_type<tc>, window_params = [{transform_indices = @transform_0, window_bounds = array<i64: 128, 32>}, {transform_indices = @transform_1, window_bounds = array<i64: 128, 32>}, {pipeline_mode = #tpu.pipeline_mode<synchronous>, transform_indices = @transform_2, window_bounds = array<i64: 32, 32>}, {transform_indices = @transform_3, window_bounds = array<i64: 1, 128>}]} {
    %c0 = arith.constant 0 : index
    %c0_0 = arith.constant 0 : index
    %0 = vector.load %arg1[%c0, %c0_0] : memref<128x32xbf16, #tpu.memory_space<vmem>>, vector<128x32xbf16>
    %c0_1 = arith.constant 0 : index
    %c0_2 = arith.constant 0 : index
    %1 = vector.load %arg3[%c0_1, %c0_2] : memref<32x32xbf16, #tpu.memory_space<vmem>>, vector<32x32xbf16>
    %cst = arith.constant dense<0.000000e+00> : vector<128x32xf32>
    %2 = tpu.matmul %0, %1, %cst {dimension_numbers = #tpu.dot_dimension_numbers<[1], [0], [0], [1], [0, 0, 1, 1], [], []>} : vector<128x32xbf16>, vector<32x32xbf16>, vector<128x32xf32> -> vector<128x32xf32>
    %c0_3 = arith.constant 0 : index
    %c0_4 = arith.constant 0 : index
    %3 = vector.load %arg2[%c0_3, %c0_4] : memref<128x32xbf16, #tpu.memory_space<vmem>>, vector<128x32xbf16>
    %4 = arith.extf %3 : vector<128x32xbf16> to vector<128x32xf32>
    %5 = arith.mulf %2, %4 : vector<128x32xf32>
    %cst_5 = arith.constant dense<0.000000e+00> : vector<128xf32>
    %6 = vector.multi_reduction <add>, %5, %cst_5 [1] : vector<128x32xf32> to vector<128xf32>
    %7 = vector.shape_cast %6 : vector<128xf32> to vector<1x128xf32>
    %c0_6 = arith.constant 0 : index
    %c0_7 = arith.constant 0 : index
    %8 = vector.load %arg4[%c0_6, %c0_7] : memref<1x128xf32, #tpu.memory_space<vmem>>, vector<1x128xf32>
    tpu.vector_store %arg4[%c0_6, %c0_7], %7 {strides = array<i32>} : memref<1x128xf32, #tpu.memory_space<vmem>>, vector<1x128xf32>,
    return
  }
  func.func @transform_0(%arg0: i32) -> (i32, i32) {
    %c0_i32 = arith.constant 0 : i32
    %c0_i32_0 = arith.constant 0 : i32
    return %arg0, %c0_i32 : i32, i32
  }
  func.func @transform_1(%arg0: i32) -> (i32, i32) {
    %c0_i32 = arith.constant 0 : i32
    %c0_i32_0 = arith.constant 0 : i32
    return %arg0, %c0_i32 : i32, i32
  }
  func.func @transform_2(%arg0: i32) -> (i32, i32) {
    %c0_i32 = arith.constant 0 : i32
    %c0_i32_0 = arith.constant 0 : i32
    %c0_i32_1 = arith.constant 0 : i32
    return %c0_i32, %c0_i32_0 : i32, i32
  }
  func.func @transform_3(%arg0: i32) -> (i32, i32) {
    %c0_i32 = arith.constant 0 : i32
    %c0_i32_0 = arith.constant 0 : i32
    return %arg0, %c0_i32 : i32, i32
  }
}

</mosaic_0001>

<llo_original>
// kernel: tpu_custom_call.1
$region0: #{tpu_custom_call.1}
  #allocation0 [shape = 'u32[]', space=smem, size = 0x4, offset = 0x4, fixed_abs, tag = 'smem constant byte address 0x4 - core index']
  #allocation1 [shape = 'u32[72,128]{1,0:T(1,128)}', space=vmem, size = 0x9000, scoped, tag = 'internal scratch']
  %s0 = inlined_call_operand.vmem [shape: bf16[128,32], index: 0, kind: input, shape index: {}]
  %s1 = inlined_call_operand.vmem [shape: bf16[128,32], index: 1, kind: input, shape index: {}]
  %s2 = inlined_call_operand.vmem [shape: bf16[32,32], index: 2, kind: input, shape index: {}]
  %s3 = inlined_call_operand.hbm [shape: f32[1,128], index: 3, kind: output, shape index: {}]
  %s4 = sld [smem:[#allocation0]]
  $region22: #{tpu_custom_call.1} parent=0
    _
  %s6 = ssub.s32 1, %s4
  %s7 = scalar_select 0, %s6, %s4
  $region1: #{tpu_custom_call.1} parent=0
    #allocation2 [shape = 'u8[512]{0}', space=vmem, size = 0x400, scoped, tag = 'output window, operand 0, single buffered']
    #allocation3 [shape = 's32[1]{0}', space=sflag, size = 0x4, scoped, tag = 'scoped memory for tpu_custom_call.1']
    %8 = vsyncpa [#allocation3], 0
    // Predicated region
    $region2: #{tpu_custom_call.1} parent=1 // pred_check
      _
    $region3: #{tpu_custom_call.1} parent=1 // pred_check_branch
      %10 = sbr.rel (0) target = $region5
    $region4: #{tpu_custom_call.1} parent=1 // pred_region
      _
    $region5: #{tpu_custom_call.1} parent=1 // pred_fallthru
      _
    // Predicated region
    $region6: #{tpu_custom_call.1} parent=1 // pred_check
      _
    $region7: #{tpu_custom_call.1} parent=1 // pred_check_branch
      %12 = sbr.rel (0) target = $region9
    $region8: #{tpu_custom_call.1} parent=1 // pred_region
      _
    $region9: #{tpu_custom_call.1} parent=1 // pred_fallthru
      _
    // Predicated region
    $region10: #{tpu_custom_call.1} parent=1 // pred_check
      _
    $region11: #{tpu_custom_call.1} parent=1 // pred_check_branch
      %14 = sbr.rel (0) target = $region13
    $region12: #{tpu_custom_call.1} parent=1 // pred_region
      _
    $region13: #{tpu_custom_call.1} parent=1 // pred_fallthru
      _
    %v16 = vld [vmem:[%s0] sm:$0xf]
    %v17 = vld [vmem:[%s0 + $0x4] sm:$0xf]
    %v18 = vld [vmem:[%s0 + $0x8] sm:$0xf]
    %v19 = vld [vmem:[%s0 + $0xc] sm:$0xf]
    %v20 = vld [vmem:[%s0 + $0x10] sm:$0xf]
    %v21 = vld [vmem:[%s0 + $0x14] sm:$0xf]
    %v22 = vld [vmem:[%s0 + $0x18] sm:$0xf]
    %v23 = vld [vmem:[%s0 + $0x1c] sm:$0xf]
    %v24 = vld [vmem:[%s0 + $0x20] sm:$0xf]
    %v25 = vld [vmem:[%s0 + $0x24] sm:$0xf]
    %v26 = vld [vmem:[%s0 + $0x28] sm:$0xf]
    %v27 = vld [vmem:[%s0 + $0x2c] sm:$0xf]
    %v28 = vld [vmem:[%s0 + $0x30] sm:$0xf]
    %v29 = vld [vmem:[%s0 + $0x34] sm:$0xf]
    %v30 = vld [vmem:[%s0 + $0x38] sm:$0xf]
    %v31 = vld [vmem:[%s0 + $0x3c] sm:$0xf]
    %v32 = vld [vmem:[%s2] sm:$0xf]
    %v33 = vld [vmem:[%s2 + $0x4] sm:$0xf]
    %v34 = vld [vmem:[%s2 + $0x8] sm:$0xf]
    %v35 = vld [vmem:[%s2 + $0xc] sm:$0xf]
    %v52 = vunpack.c.l.b16 %v16
    %v53 = vunpack.c.l.b16 %v17
    %v54 = vunpack.c.l.b16 %v18
    %v55 = vunpack.c.l.b16 %v19
    %v56 = vunpack.c.l.b16 %v20
    %v57 = vunpack.c.l.b16 %v21
    %v58 = vunpack.c.l.b16 %v22
    %v59 = vunpack.c.l.b16 %v23
    %v60 = vunpack.c.l.b16 %v24
    %v61 = vunpack.c.l.b16 %v25
    %v62 = vunpack.c.l.b16 %v26
    %v63 = vunpack.c.l.b16 %v27
    %v64 = vunpack.c.l.b16 %v28
    %v65 = vunpack.c.l.b16 %v29
    %v66 = vunpack.c.l.b16 %v30
    %v67 = vunpack.c.l.b16 %v31
    %v68 = vpack.c.b16 %v53, %v52
    %v69 = vpack.c.b16 %v55, %v54
    %v70 = vpack.c.b16 %v57, %v56
    %v71 = vpack.c.b16 %v59, %v58
    %v72 = vpack.c.b16 %v61, %v60
    %v73 = vpack.c.b16 %v63, %v62
    %v74 = vpack.c.b16 %v65, %v64
    %v75 = vpack.c.b16 %v67, %v66
    %v80 = vunpack.c.l.b16 %v32
    %v81 = vunpack.c.l.b16 %v33
    %v82 = vunpack.c.l.b16 %v34
    %v83 = vunpack.c.l.b16 %v35
    %v84 = vpack.c.b16 %v81, %v80
    %v85 = vpack.c.b16 %v83, %v82
    %vm88 = vcmask 261120
    %v90 = vsel %vm88, %v68, 0
    %v93 = vsel %vm88, %v69, 0
    %v96 = vsel %vm88, %v70, 0
    %v99 = vsel %vm88, %v71, 0
    %v102 = vsel %vm88, %v72, 0
    %v105 = vsel %vm88, %v73, 0
    %v108 = vsel %vm88, %v74, 0
    %v111 = vsel %vm88, %v75, 0
    %113 = vmatpush.bf16.msra.mxu0 0
    %114 = vmatpush.bf16.msra.mxu0 0
    %115 = vmatpush.bf16.msra.mxu0 0
    %116 = vmatpush.bf16.msra.mxu0 0
    %117 = vmatpush.bf16.msra.mxu0 0
    %118 = vmatpush.bf16.msra.mxu0 0
    %119 = vmatpush.bf16.msra.mxu0 %v85
    %120 = vmatpush.bf16.msra.mxu0 %v84
    %121 = vmatmul.bf16.gmra.mxu0 %v90
    %v122 = vpop.f32.mrf.mxu0
    %v123 = vadd.f32 0.0, %v122
    %v124 = vpop.f32.mrf.mxu0
    %v125 = vadd.f32 0.0, %v124
    %126 = vmatmul.bf16.gmra.mxu0 %v93
    %v127 = vpop.f32.mrf.mxu0
    %v128 = vadd.f32 0.0, %v127
    %v129 = vpop.f32.mrf.mxu0
    %v130 = vadd.f32 0.0, %v129
    %131 = vmatmul.bf16.gmra.mxu0 %v96
    %v132 = vpop.f32.mrf.mxu0
    %v133 = vadd.f32 0.0, %v132
    %v134 = vpop.f32.mrf.mxu0
    %v135 = vadd.f32 0.0, %v134
    %136 = vmatmul.bf16.gmra.mxu0 %v99
    %v137 = vpop.f32.mrf.mxu0
    %v138 = vadd.f32 0.0, %v137
    %v139 = vpop.f32.mrf.mxu0
    %v140 = vadd.f32 0.0, %v139
    %141 = vmatmul.bf16.gmra.mxu0 %v102
    %v142 = vpop.f32.mrf.mxu0
    %v143 = vadd.f32 0.0, %v142
    %v144 = vpop.f32.mrf.mxu0
    %v145 = vadd.f32 0.0, %v144
    %146 = vmatmul.bf16.gmra.mxu0 %v105
    %v147 = vpop.f32.mrf.mxu0
    %v148 = vadd.f32 0.0, %v147
    %v149 = vpop.f32.mrf.mxu0
    %v150 = vadd.f32 0.0, %v149
    %151 = vmatmul.bf16.gmra.mxu0 %v108
    %v152 = vpop.f32.mrf.mxu0
    %v153 = vadd.f32 0.0, %v152
    %v154 = vpop.f32.mrf.mxu0
    %v155 = vadd.f32 0.0, %v154
    %156 = vmatmul.bf16.gmra.mxu0 %v111
    %v157 = vpop.f32.mrf.mxu0
    %v158 = vadd.f32 0.0, %v157
    %v159 = vpop.f32.mrf.mxu0
    %v160 = vadd.f32 0.0, %v159
    %161 = vdwg.mxu0
    %v162 = vld [vmem:[%s1] sm:$0xf]
    %v163 = vld [vmem:[%s1 + $0x4] sm:$0xf]
    %v164 = vld [vmem:[%s1 + $0x8] sm:$0xf]
    %v165 = vld [vmem:[%s1 + $0xc] sm:$0xf]
    %v166 = vld [vmem:[%s1 + $0x10] sm:$0xf]
    %v167 = vld [vmem:[%s1 + $0x14] sm:$0xf]
    %v168 = vld [vmem:[%s1 + $0x18] sm:$0xf]
    %v169 = vld [vmem:[%s1 + $0x1c] sm:$0xf]
    %v170 = vld [vmem:[%s1 + $0x20] sm:$0xf]
    %v171 = vld [vmem:[%s1 + $0x24] sm:$0xf]
    %v172 = vld [vmem:[%s1 + $0x28] sm:$0xf]
    %v173 = vld [vmem:[%s1 + $0x2c] sm:$0xf]
    %v174 = vld [vmem:[%s1 + $0x30] sm:$0xf]
    %v175 = vld [vmem:[%s1 + $0x34] sm:$0xf]
    %v176 = vld [vmem:[%s1 + $0x38] sm:$0xf]
    %v177 = vld [vmem:[%s1 + $0x3c] sm:$0xf]
    %v178 = vunpack.c.l.bf16 %v162
    %v179 = vunpack.c.l.bf16 %v163
    %v180 = vunpack.c.l.bf16 %v164
    %v181 = vunpack.c.l.bf16 %v165
    %v182 = vunpack.c.l.bf16 %v166
    %v183 = vunpack.c.l.bf16 %v167
    %v184 = vunpack.c.l.bf16 %v168
    %v185 = vunpack.c.l.bf16 %v169
    %v186 = vunpack.c.l.bf16 %v170
    %v187 = vunpack.c.l.bf16 %v171
    %v188 = vunpack.c.l.bf16 %v172
    %v189 = vunpack.c.l.bf16 %v173
    %v190 = vunpack.c.l.bf16 %v174
    %v191 = vunpack.c.l.bf16 %v175
    %v192 = vunpack.c.l.bf16 %v176
    %v193 = vunpack.c.l.bf16 %v177
    %v194 = vmul.f32 %v123, %v178
    %v195 = vmul.f32 %v125, %v179
    %v196 = vmul.f32 %v128, %v180
    %v197 = vmul.f32 %v130, %v181
    %v198 = vmul.f32 %v133, %v182
    %v199 = vmul.f32 %v135, %v183
    %v200 = vmul.f32 %v138, %v184
    %v201 = vmul.f32 %v140, %v185
    %v202 = vmul.f32 %v143, %v186
    %v203 = vmul.f32 %v145, %v187
    %v204 = vmul.f32 %v148, %v188
    %v205 = vmul.f32 %v150, %v189
    %v206 = vmul.f32 %v153, %v190
    %v207 = vmul.f32 %v155, %v191
    %v208 = vmul.f32 %v158, %v192
    %v209 = vmul.f32 %v160, %v193
    %v210 = vsel %vm88, %v194, 0.0
    %211 = vadd.xlane.f32.xlu0 %v210
    %v212 = vpop.xlane.xlu0 %211
    %v213 = vsel %vm88, %v195, 0.0
    %214 = vadd.xlane.f32.xlu0 %v213
    %v215 = vpop.xlane.xlu0 %214
    %v216 = vsel %vm88, %v196, 0.0
    %217 = vadd.xlane.f32.xlu0 %v216
    %v218 = vpop.xlane.xlu0 %217
    %v219 = vsel %vm88, %v197, 0.0
    %220 = vadd.xlane.f32.xlu0 %v219
    %v221 = vpop.xlane.xlu0 %220
    %v222 = vsel %vm88, %v198, 0.0
    %223 = vadd.xlane.f32.xlu0 %v222
    %v224 = vpop.xlane.xlu0 %223
    %v225 = vsel %vm88, %v199, 0.0
    %226 = vadd.xlane.f32.xlu0 %v225
    %v227 = vpop.xlane.xlu0 %226
    %v228 = vsel %vm88, %v200, 0.0
    %229 = vadd.xlane.f32.xlu0 %v228
    %v230 = vpop.xlane.xlu0 %229
    %v231 = vsel %vm88, %v201, 0.0
    %232 = vadd.xlane.f32.xlu0 %v231
    %v233 = vpop.xlane.xlu0 %232
    %v234 = vsel %vm88, %v202, 0.0
    %235 = vadd.xlane.f32.xlu0 %v234
    %v236 = vpop.xlane.xlu0 %235
    %v237 = vsel %vm88, %v203, 0.0
    %238 = vadd.xlane.f32.xlu0 %v237
    %v239 = vpop.xlane.xlu0 %238
    %v240 = vsel %vm88, %v204, 0.0
    %241 = vadd.xlane.f32.xlu0 %v240
    %v242 = vpop.xlane.xlu0 %241
    %v243 = vsel %vm88, %v205, 0.0
    %244 = vadd.xlane.f32.xlu0 %v243
    %v245 = vpop.xlane.xlu0 %244
    %v246 = vsel %vm88, %v206, 0.0
    %247 = vadd.xlane.f32.xlu0 %v246
    %v248 = vpop.xlane.xlu0 %247
    %v249 = vsel %vm88, %v207, 0.0
    %250 = vadd.xlane.f32.xlu0 %v249
    %v251 = vpop.xlane.xlu0 %250
    %v252 = vsel %vm88, %v208, 0.0
    %253 = vadd.xlane.f32.xlu0 %v252
    %v254 = vpop.xlane.xlu0 %253
    %v255 = vsel %vm88, %v209, 0.0
    %256 = vadd.xlane.f32.xlu0 %v255
    %v257 = vpop.xlane.xlu0 %256
    %v274 = vlaneseq
    %v275 = vand.u32 %v274, 127
    %v276 = vperm.slane %v212, %v275
    %v277 = vadd.s32 %v275, 4294967288
    %v278 = vperm.slane %v215, %v277
    %vm279 = vcmask 130112
    %v280 = vsel %vm279, %v278, %v276
    %v281 = vadd.s32 %v275, 4294967280
    %v282 = vperm.slane %v218, %v281
    %vm283 = vcmask 195712
    %v284 = vsel %vm283, %v282, %v280
    %v285 = vadd.s32 %v275, 4294967272
    %v286 = vperm.slane %v221, %v285
    %vm287 = vcmask 261312
    %v288 = vsel %vm287, %v286, %v284
    %v289 = vadd.s32 %v275, 4294967264
    %v290 = vperm.slane %v224, %v289
    %vm291 = vcmask 326912
    %v292 = vsel %vm291, %v290, %v288
    %v293 = vadd.s32 %v275, 4294967256
    %v294 = vperm.slane %v227, %v293
    %vm295 = vcmask 392512
    %v296 = vsel %vm295, %v294, %v292
    %v297 = vadd.s32 %v275, 4294967248
    %v298 = vperm.slane %v230, %v297
    %vm299 = vcmask 458112
    %v300 = vsel %vm299, %v298, %v296
    %v301 = vadd.s32 %v275, 4294967240
    %v302 = vperm.slane %v233, %v301
    %vm303 = vcmask 523712
    %v304 = vsel %vm303, %v302, %v300
    %v305 = vadd.s32 %v275, 4294967232
    %v306 = vperm.slane %v236, %v305
    %vm307 = vcmask 589312
    %v308 = vsel %vm307, %v306, %v304
    %v309 = vadd.s32 %v275, 4294967224
    %v310 = vperm.slane %v239, %v309
    %vm311 = vcmask 654912
    %v312 = vsel %vm311, %v310, %v308
    %v313 = vadd.s32 %v275, 4294967216
    %v314 = vperm.slane %v242, %v313
    %vm315 = vcmask 720512
    %v316 = vsel %vm315, %v314, %v312
    %v317 = vadd.s32 %v275, 4294967208
    %v318 = vperm.slane %v245, %v317
    %vm319 = vcmask 786112
    %v320 = vsel %vm319, %v318, %v316
    %v321 = vadd.s32 %v275, 4294967200
    %v322 = vperm.slane %v248, %v321
    %vm323 = vcmask 851712
    %v324 = vsel %vm323, %v322, %v320
    %v325 = vadd.s32 %v275, 4294967192
    %v326 = vperm.slane %v251, %v325
    %vm327 = vcmask 917312
    %v328 = vsel %vm327, %v326, %v324
    %v329 = vadd.s32 %v275, 4294967184
    %v330 = vperm.slane %v254, %v329
    %vm331 = vcmask 982912
    %v332 = vsel %vm331, %v330, %v328
    %v333 = vadd.s32 %v275, 4294967176
    %v334 = vperm.slane %v257, %v333
    %vm335 = vcmask 1048512
    %v336 = vsel %vm335, %v334, %v332
    %338 = vst [vmem:[#allocation2] sm:$0x1] %v336
    // Predicated region
    $region14: #{tpu_custom_call.1} parent=1 // pred_check
      _
    $region15: #{tpu_custom_call.1} parent=1 // pred_check_branch
      %340 = sbr.rel (0) target = $region17
    $region16: #{tpu_custom_call.1} parent=1 // pred_region
      %342 = vsyncadd [#allocation3], 0
      %s344 = sshll.u32 [#allocation2], 4
      %s345 = int_to_ptr.vmem [resolvable:$true] %s344
      %s346 = sshll.u32 %s3, 4
      %s347 = int_to_ptr.hbm [resolvable:$true] %s346
      %349 = dma.vmem_to_hbm [thread:$0]  %s345, 16, %s347, [#allocation3]
    $region17: #{tpu_custom_call.1} parent=1 // pred_fallthru
      _
    // Predicated region
    $region18: #{tpu_custom_call.1} parent=1 // pred_check
      _
    $region19: #{tpu_custom_call.1} parent=1 // pred_check_branch
      %351 = sbr.rel (0) target = $region21
    $region20: #{tpu_custom_call.1} parent=1 // pred_region
      %353 = dma.done [#allocation3], 16
    $region21: #{tpu_custom_call.1} parent=1 // pred_fallthru
      _
    %354 = vsyncpa [#allocation3], 1

</llo_original>
